<compile_context>
chip_gen: v7x
topology: tpu7x:2x2x1
jax: 0.10.0
libtpu: 0.0.40
codegen_flags: <defaults>
</compile_context>

<pallas_src>
import functools

import jax
import jax.numpy as jnp
from jax.experimental import pallas as pl
from jax.experimental.pallas import tpu as pltpu


def _make_fused_mlp_kernel(n_layers: int):
    """Kernel: (x_ref, w0_ref, ..., w{n-1}_ref, o_ref) -> o = x @ w0 @ ... @ w{n-1}."""

    def kernel(*refs):
        x_ref = refs[0]
        w_refs = refs[1:1 + n_layers]
        o_ref = refs[-1]

        h = x_ref[...]
        for w_ref in w_refs:
            # MXU matmul with f32 accumulation; intermediates never leave VMEM/vregs.
            h = jnp.dot(h, w_ref[...], preferred_element_type=jnp.float32)
        # Only the final (narrow) output pays an HBM store.
        o_ref[...] = h.astype(o_ref.dtype)

    return kernel


def _pick_batch_tile(m: int) -> int:
    """Largest tile <= 512 that divides M and is a multiple of 8; else full M."""
    if m % 8 != 0:
        return m
    for tm in (512, 256, 128, 64, 32, 16, 8):
        if m % tm == 0:
            return tm
    return m


@jax.jit
def _fused_mlp_forward(x: jax.Array, *weights_t: jax.Array) -> jax.Array:
    """out = x @ Wt0 @ Wt1 @ ...  with Wt_i pre-transposed to (in_f, out_f)."""
    n_layers = len(weights_t)
    m, _ = x.shape
    n = weights_t[-1].shape[1]

    tm = _pick_batch_tile(m)
    grid = (m // tm,)

    # Activations: tile over batch. Weights: one full (resident) block each.
    in_specs = [pl.BlockSpec((tm, x.shape[1]), lambda i: (i, 0))]
    for w in weights_t:
        in_specs.append(pl.BlockSpec(w.shape, lambda i: (0, 0)))
    out_spec = pl.BlockSpec((tm, n), lambda i: (i, 0))

    return pl.pallas_call(
        _make_fused_mlp_kernel(n_layers),
        out_shape=jax.ShapeDtypeStruct((m, n), x.dtype),
        grid=grid,
        in_specs=in_specs,
        out_specs=out_spec,
        compiler_params=pltpu.CompilerParams(
            dimension_semantics=("parallel",)
        ),
    )(x, *weights_t)


class SingleMLPPallas:
    """Mirror of SingleMLP: flattened chain of bias-free linears, fused on TPU."""

    def __init__(self, sizes, activations, dtype=jnp.float32):
        assert len(activations) == len(sizes), (
            "Number of activations must be equal to world_size"
        )
        # Pre-transpose at init: store weights as (in_features, out_features) so
        # the kernel computes lane-major x @ Wt with no per-call transpose.
        # LDLinear init: weight = 0.5 * ones((out_f, in_f)), bias=False.
        self.weights_t = []
        for node_sizes in sizes:
            for i in range(len(node_sizes) - 1):
                in_f, out_f = node_sizes[i], node_sizes[i + 1]
                self.weights_t.append(jnp.full((in_f, out_f), 0.5, dtype=dtype))
        # TODO(synk): `activations` are accepted but unused, matching the
        # reference forward() which applies no activation functions.

    def __call__(self, x):
        return _fused_mlp_forward(x, *self.weights_t)


if __name__ == "__main__":
    # Small deterministic config consistent with the module's forward:
    # two "nodes", each a chain of bias-free linears; output of one feeds the next.
    sizes = [[32, 64, 32], [32, 16]]
    activations = ["relu", "relu"]  # interface parity only; unused by forward()

    model = SingleMLPPallas(sizes, activations, dtype=jnp.float32)

    key = jax.random.PRNGKey(0)
    batch = 8
    x = jax.random.normal(key, (batch, sizes[0][0]), dtype=jnp.float32)

    out = model(x)
    out = jax.block_until_ready(out)

    # Pure-JAX reference (same pre-transposed weights).
    ref = x
    for wt in model.weights_t:
        ref = ref @ wt
    assert out.shape == (batch, sizes[-1][-1]), out.shape
    assert jnp.allclose(out, ref, rtol=1e-4, atol=1e-4), "mismatch vs reference"

    print("KERNEL_OK")
</pallas_src>

<mosaic_0001>
module attributes {stable_mosaic.version = 11 : i64} {
  func.func @kernel(%arg0: i32, %arg1: memref<8x32xf32, #tpu.memory_space<vmem>>, %arg2: memref<32x64xf32, #tpu.memory_space<vmem>>, %arg3: memref<64x32xf32, #tpu.memory_space<vmem>>, %arg4: memref<32x16xf32, #tpu.memory_space<vmem>>, %arg5: memref<8x16xf32, #tpu.memory_space<vmem>>) attributes {dimension_semantics = [#tpu.dimension_semantics<parallel>], iteration_bounds = array<i64: 1>, scalar_prefetch = 0 : i64, scratch_operands = 0 : i64, tpu.core_type = #tpu.core_type<tc>, window_params = [{transform_indices = @transform_0, window_bounds = array<i64: 8, 32>}, {pipeline_mode = #tpu.pipeline_mode<synchronous>, transform_indices = @transform_1, window_bounds = array<i64: 32, 64>}, {pipeline_mode = #tpu.pipeline_mode<synchronous>, transform_indices = @transform_2, window_bounds = array<i64: 64, 32>}, {pipeline_mode = #tpu.pipeline_mode<synchronous>, transform_indices = @transform_3, window_bounds = array<i64: 32, 16>}, {transform_indices = @transform_4, window_bounds = array<i64: 8, 16>}]} {
    %c0 = arith.constant 0 : index
    %c0_0 = arith.constant 0 : index
    %0 = vector.load %arg1[%c0, %c0_0] : memref<8x32xf32, #tpu.memory_space<vmem>>, vector<8x32xf32>
    %c0_1 = arith.constant 0 : index
    %c0_2 = arith.constant 0 : index
    %1 = vector.load %arg2[%c0_1, %c0_2] : memref<32x64xf32, #tpu.memory_space<vmem>>, vector<32x64xf32>
    %cst = arith.constant dense<0.000000e+00> : vector<8x64xf32>
    %2 = tpu.matmul %0, %1, %cst {dimension_numbers = #tpu.dot_dimension_numbers<[1], [0], [0], [1], [0, 0, 1, 1], [], []>} : vector<8x32xf32>, vector<32x64xf32>, vector<8x64xf32> -> vector<8x64xf32>
    %c0_3 = arith.constant 0 : index
    %c0_4 = arith.constant 0 : index
    %3 = vector.load %arg3[%c0_3, %c0_4] : memref<64x32xf32, #tpu.memory_space<vmem>>, vector<64x32xf32>
    %cst_5 = arith.constant dense<0.000000e+00> : vector<8x32xf32>
    %4 = tpu.matmul %2, %3, %cst_5 {dimension_numbers = #tpu.dot_dimension_numbers<[1], [0], [0], [1], [0, 0, 1, 1], [], []>} : vector<8x64xf32>, vector<64x32xf32>, vector<8x32xf32> -> vector<8x32xf32>
    %c0_6 = arith.constant 0 : index
    %c0_7 = arith.constant 0 : index
    %5 = vector.load %arg4[%c0_6, %c0_7] : memref<32x16xf32, #tpu.memory_space<vmem>>, vector<32x16xf32>
    %cst_8 = arith.constant dense<0.000000e+00> : vector<8x16xf32>
    %6 = tpu.matmul %4, %5, %cst_8 {dimension_numbers = #tpu.dot_dimension_numbers<[1], [0], [0], [1], [0, 0, 1, 1], [], []>} : vector<8x32xf32>, vector<32x16xf32>, vector<8x16xf32> -> vector<8x16xf32>
    %c0_9 = arith.constant 0 : index
    %c0_10 = arith.constant 0 : index
    %7 = vector.load %arg5[%c0_9, %c0_10] : memref<8x16xf32, #tpu.memory_space<vmem>>, vector<8x16xf32>
    tpu.vector_store %arg5[%c0_9, %c0_10], %6 {strides = array<i32>} : memref<8x16xf32, #tpu.memory_space<vmem>>, vector<8x16xf32>,
    return
  }
  func.func @transform_0(%arg0: i32) -> (i32, i32) {
    %c0_i32 = arith.constant 0 : i32
    %c0_i32_0 = arith.constant 0 : i32
    return %arg0, %c0_i32 : i32, i32
  }
  func.func @transform_1(%arg0: i32) -> (i32, i32) {
    %c0_i32 = arith.constant 0 : i32
    %c0_i32_0 = arith.constant 0 : i32
    %c0_i32_1 = arith.constant 0 : i32
    return %c0_i32, %c0_i32_0 : i32, i32
  }
  func.func @transform_2(%arg0: i32) -> (i32, i32) {
    %c0_i32 = arith.constant 0 : i32
    %c0_i32_0 = arith.constant 0 : i32
    %c0_i32_1 = arith.constant 0 : i32
    return %c0_i32, %c0_i32_0 : i32, i32
  }
  func.func @transform_3(%arg0: i32) -> (i32, i32) {
    %c0_i32 = arith.constant 0 : i32
    %c0_i32_0 = arith.constant 0 : i32
    %c0_i32_1 = arith.constant 0 : i32
    return %c0_i32, %c0_i32_0 : i32, i32
  }
  func.func @transform_4(%arg0: i32) -> (i32, i32) {
    %c0_i32 = arith.constant 0 : i32
    %c0_i32_0 = arith.constant 0 : i32
    return %arg0, %c0_i32 : i32, i32
  }
}

</mosaic_0001>

<llo_original>
// kernel: _fused_mlp_forward.1
$region0: #{_fused_mlp_forward.1}
  #allocation0 [shape = 'u32[]', space=smem, size = 0x4, offset = 0x4, fixed_abs, tag = 'smem constant byte address 0x4 - core index']
  #allocation1 [shape = 'u32[144,128]{1,0:T(1,128)}', space=vmem, size = 0x12000, scoped, tag = 'internal scratch']
  %s0 = inlined_call_operand.vmem [shape: f32[8,32], index: 0, kind: input, shape index: {}]
  %s1 = inlined_call_operand.vmem [shape: f32[32,64], index: 1, kind: input, shape index: {}]
  %s2 = inlined_call_operand.vmem [shape: f32[64,32], index: 2, kind: input, shape index: {}]
  %s3 = inlined_call_operand.vmem [shape: f32[32,16], index: 3, kind: input, shape index: {}]
  %s4 = inlined_call_operand.hbm [shape: f32[8,16], index: 4, kind: output, shape index: {}]
  %s5 = sld [smem:[#allocation0]]
  $region26: #{_fused_mlp_forward.1} parent=0
    _
  %s7 = ssub.s32 1, %s5
  %s8 = scalar_select 0, %s7, %s5
  $region1: #{_fused_mlp_forward.1} parent=0
    #allocation2 [shape = 'u8[4096]{0}', space=vmem, size = 0x1000, scoped, tag = 'output window, operand 0, single buffered']
    #allocation3 [shape = 's32[1]{0}', space=sflag, size = 0x4, scoped, tag = 'scoped memory for _fused_mlp_forward.1']
    %9 = vsyncpa [#allocation3], 0
    // Predicated region
    $region2: #{_fused_mlp_forward.1} parent=1 // pred_check
      _
    $region3: #{_fused_mlp_forward.1} parent=1 // pred_check_branch
      %11 = sbr.rel (0) target = $region5
    $region4: #{_fused_mlp_forward.1} parent=1 // pred_region
      _
    $region5: #{_fused_mlp_forward.1} parent=1 // pred_fallthru
      _
    // Predicated region
    $region6: #{_fused_mlp_forward.1} parent=1 // pred_check
      _
    $region7: #{_fused_mlp_forward.1} parent=1 // pred_check_branch
      %13 = sbr.rel (0) target = $region9
    $region8: #{_fused_mlp_forward.1} parent=1 // pred_region
      _
    $region9: #{_fused_mlp_forward.1} parent=1 // pred_fallthru
      _
    // Predicated region
    $region10: #{_fused_mlp_forward.1} parent=1 // pred_check
      _
    $region11: #{_fused_mlp_forward.1} parent=1 // pred_check_branch
      %15 = sbr.rel (0) target = $region13
    $region12: #{_fused_mlp_forward.1} parent=1 // pred_region
      _
    $region13: #{_fused_mlp_forward.1} parent=1 // pred_fallthru
      _
    // Predicated region
    $region14: #{_fused_mlp_forward.1} parent=1 // pred_check
      _
    $region15: #{_fused_mlp_forward.1} parent=1 // pred_check_branch
      %17 = sbr.rel (0) target = $region17
    $region16: #{_fused_mlp_forward.1} parent=1 // pred_region
      _
    $region17: #{_fused_mlp_forward.1} parent=1 // pred_fallthru
      _
    %v18 = vld [vmem:[%s0] sm:$0xff]
    %v19 = vld [vmem:[%s1] sm:$0xff]
    %v20 = vld [vmem:[%s1 + $0x8] sm:$0xff]
    %v21 = vld [vmem:[%s1 + $0x10] sm:$0xff]
    %v22 = vld [vmem:[%s1 + $0x18] sm:$0xff]
    %vm23 = vcmask 261120
    %v25 = vsel %vm23, %v18, 0
    %27 = vmatprep.subr.mxu0 0.0
    %28 = vmatpush1.msra.mxu0 %v19
    %29 = vmatprep.subr.mxu0 0.0
    %30 = vmatpush1.msra.mxu0 %v20
    %31 = vmatprep.subr.mxu0 0.0
    %32 = vmatpush1.msra.mxu0 %v21
    %33 = vmatprep.subr.mxu0 0.0
    %34 = vmatpush1.msra.mxu0 %v22
    %35 = vmatprep.subr.mxu0 0.0
    %36 = vmatpush1.msra.mxu0 0.0
    %37 = vmatprep.subr.mxu0 0.0
    %38 = vmatpush1.msra.mxu0 0.0
    %39 = vmatprep.subr.mxu0 0.0
    %40 = vmatpush1.msra.mxu0 0.0
    %41 = vmatprep.subr.mxu0 0.0
    %42 = vmatpush1.msra.mxu0 0.0
    %43 = vmatprep.subr.mxu0 0.0
    %44 = vmatpush1.msra.mxu0 0.0
    %45 = vmatprep.subr.mxu0 0.0
    %46 = vmatpush1.msra.mxu0 0.0
    %47 = vmatprep.subr.mxu0 0.0
    %48 = vmatpush1.msra.mxu0 0.0
    %49 = vmatprep.subr.mxu0 0.0
    %50 = vmatpush1.msra.mxu0 0.0
    %51 = vmatprep.subr.mxu0 0.0
    %52 = vmatpush1.msra.mxu0 0.0
    %53 = vmatprep.subr.mxu0 0.0
    %54 = vmatpush1.msra.mxu0 0.0
    %55 = vmatprep.subr.mxu0 0.0
    %56 = vmatpush1.msra.mxu0 0.0
    %57 = vmatprep.subr.mxu0 0.0
    %58 = vmatpush1.msra.mxu0 0.0
    %59 = vmatprep.subr.mxu0 0.0
    %60 = vmatpush1.msra.mxu0 0.0
    %61 = vmatprep.subr.mxu0 0.0
    %62 = vmatpush1.msra.mxu0 0.0
    %63 = vmatprep.subr.mxu0 0.0
    %64 = vmatpush1.msra.mxu0 0.0
    %65 = vmatprep.subr.mxu0 0.0
    %66 = vmatpush1.msra.mxu0 0.0
    %67 = vmatprep.subr.mxu0 0.0
    %68 = vmatpush1.msra.mxu0 0.0
    %69 = vmatprep.subr.mxu0 0.0
    %70 = vmatpush1.msra.mxu0 0.0
    %71 = vmatprep.subr.mxu0 0.0
    %72 = vmatpush1.msra.mxu0 0.0
    %73 = vmatprep.subr.mxu0 0.0
    %74 = vmatpush1.msra.mxu0 0.0
    %75 = vmatprep.subr.mxu0 0.0
    %76 = vmatpush1.msra.mxu0 0.0
    %77 = vmatprep.subr.mxu0 0.0
    %78 = vmatpush1.msra.mxu0 0.0
    %79 = vmatprep.subr.mxu0 0.0
    %80 = vmatpush1.msra.mxu0 0.0
    %81 = vmatprep.subr.mxu0 0.0
    %82 = vmatpush1.msra.mxu0 0.0
    %83 = vmatprep.subr.mxu0 0.0
    %84 = vmatpush1.msra.mxu0 0.0
    %85 = vmatprep.subr.mxu0 0.0
    %86 = vmatpush1.msra.mxu0 0.0
    %87 = vmatprep.subr.mxu0 0.0
    %88 = vmatpush1.msra.mxu0 0.0
    %89 = vmatprep.subr.mxu0 0.0
    %90 = vmatpush1.msra.mxu0 0.0
    %91 = vmatprep.mubr.f32.mxu0 0.0
    %92 = vmatmul.mubr.f32.gmra.mrb[0].mxu0 %v25
    %v93 = vpop.f32.mrb[0].mxu0
    %v94 = vadd.f32 0.0, %v93
    %v95 = vpop.f32.mrb[0].mxu0
    %96 = vdwg.mxu0
    %v97 = vld [vmem:[%s2] sm:$0xff]
    %v98 = vld [vmem:[%s2 + $0x8] sm:$0xff]
    %v99 = vld [vmem:[%s2 + $0x10] sm:$0xff]
    %v100 = vld [vmem:[%s2 + $0x18] sm:$0xff]
    %v101 = vld [vmem:[%s2 + $0x20] sm:$0xff]
    %v102 = vld [vmem:[%s2 + $0x28] sm:$0xff]
    %v103 = vld [vmem:[%s2 + $0x30] sm:$0xff]
    %v104 = vld [vmem:[%s2 + $0x38] sm:$0xff]
    %vm105 = vcmask 523264
    %v107 = vsel %vm105, %v94, 0
    %109 = vmatprep.subr.mxu0 0.0
    %110 = vmatpush1.msra.mxu0 %v97
    %111 = vmatprep.subr.mxu0 0.0
    %112 = vmatpush1.msra.mxu0 %v98
    %113 = vmatprep.subr.mxu0 0.0
    %114 = vmatpush1.msra.mxu0 %v99
    %115 = vmatprep.subr.mxu0 0.0
    %116 = vmatpush1.msra.mxu0 %v100
    %117 = vmatprep.subr.mxu0 0.0
    %118 = vmatpush1.msra.mxu0 %v101
    %119 = vmatprep.subr.mxu0 0.0
    %120 = vmatpush1.msra.mxu0 %v102
    %121 = vmatprep.subr.mxu0 0.0
    %122 = vmatpush1.msra.mxu0 %v103
    %123 = vmatprep.subr.mxu0 0.0
    %124 = vmatpush1.msra.mxu0 %v104
    %125 = vmatprep.subr.mxu0 0.0
    %126 = vmatpush1.msra.mxu0 0.0
    %127 = vmatprep.subr.mxu0 0.0
    %128 = vmatpush1.msra.mxu0 0.0
    %129 = vmatprep.subr.mxu0 0.0
    %130 = vmatpush1.msra.mxu0 0.0
    %131 = vmatprep.subr.mxu0 0.0
    %132 = vmatpush1.msra.mxu0 0.0
    %133 = vmatprep.subr.mxu0 0.0
    %134 = vmatpush1.msra.mxu0 0.0
    %135 = vmatprep.subr.mxu0 0.0
    %136 = vmatpush1.msra.mxu0 0.0
    %137 = vmatprep.subr.mxu0 0.0
    %138 = vmatpush1.msra.mxu0 0.0
    %139 = vmatprep.subr.mxu0 0.0
    %140 = vmatpush1.msra.mxu0 0.0
    %141 = vmatprep.subr.mxu0 0.0
    %142 = vmatpush1.msra.mxu0 0.0
    %143 = vmatprep.subr.mxu0 0.0
    %144 = vmatpush1.msra.mxu0 0.0
    %145 = vmatprep.subr.mxu0 0.0
    %146 = vmatpush1.msra.mxu0 0.0
    %147 = vmatprep.subr.mxu0 0.0
    %148 = vmatpush1.msra.mxu0 0.0
    %149 = vmatprep.subr.mxu0 0.0
    %150 = vmatpush1.msra.mxu0 0.0
    %151 = vmatprep.subr.mxu0 0.0
    %152 = vmatpush1.msra.mxu0 0.0
    %153 = vmatprep.subr.mxu0 0.0
    %154 = vmatpush1.msra.mxu0 0.0
    %155 = vmatprep.subr.mxu0 0.0
    %156 = vmatpush1.msra.mxu0 0.0
    %157 = vmatprep.subr.mxu0 0.0
    %158 = vmatpush1.msra.mxu0 0.0
    %159 = vmatprep.subr.mxu0 0.0
    %160 = vmatpush1.msra.mxu0 0.0
    %161 = vmatprep.subr.mxu0 0.0
    %162 = vmatpush1.msra.mxu0 0.0
    %163 = vmatprep.subr.mxu0 0.0
    %164 = vmatpush1.msra.mxu0 0.0
    %165 = vmatprep.subr.mxu0 0.0
    %166 = vmatpush1.msra.mxu0 0.0
    %167 = vmatprep.subr.mxu0 0.0
    %168 = vmatpush1.msra.mxu0 0.0
    %169 = vmatprep.subr.mxu0 0.0
    %170 = vmatpush1.msra.mxu0 0.0
    %171 = vmatprep.subr.mxu0 0.0
    %172 = vmatpush1.msra.mxu0 0.0
    %173 = vmatprep.mubr.f32.mxu0 0.0
    %174 = vmatmul.mubr.f32.gmra.mrb[0].mxu0 %v107
    %v175 = vpop.f32.mrb[0].mxu0
    %v176 = vadd.f32 0.0, %v175
    %v177 = vpop.f32.mrb[0].mxu0
    %178 = vdwg.mxu0
    %v179 = vld [vmem:[%s3] sm:$0xff]
    %v180 = vld [vmem:[%s3 + $0x8] sm:$0xff]
    %v181 = vld [vmem:[%s3 + $0x10] sm:$0xff]
    %v182 = vld [vmem:[%s3 + $0x18] sm:$0xff]
    %v184 = vsel %vm23, %v176, 0
    %186 = vmatprep.subr.mxu0 0.0
    %187 = vmatpush1.msra.mxu0 %v179
    %188 = vmatprep.subr.mxu0 0.0
    %189 = vmatpush1.msra.mxu0 %v180
    %190 = vmatprep.subr.mxu0 0.0
    %191 = vmatpush1.msra.mxu0 %v181
    %192 = vmatprep.subr.mxu0 0.0
    %193 = vmatpush1.msra.mxu0 %v182
    %194 = vmatprep.subr.mxu0 0.0
    %195 = vmatpush1.msra.mxu0 0.0
    %196 = vmatprep.subr.mxu0 0.0
    %197 = vmatpush1.msra.mxu0 0.0
    %198 = vmatprep.subr.mxu0 0.0
    %199 = vmatpush1.msra.mxu0 0.0
    %200 = vmatprep.subr.mxu0 0.0
    %201 = vmatpush1.msra.mxu0 0.0
    %202 = vmatprep.subr.mxu0 0.0
    %203 = vmatpush1.msra.mxu0 0.0
    %204 = vmatprep.subr.mxu0 0.0
    %205 = vmatpush1.msra.mxu0 0.0
    %206 = vmatprep.subr.mxu0 0.0
    %207 = vmatpush1.msra.mxu0 0.0
    %208 = vmatprep.subr.mxu0 0.0
    %209 = vmatpush1.msra.mxu0 0.0
    %210 = vmatprep.subr.mxu0 0.0
    %211 = vmatpush1.msra.mxu0 0.0
    %212 = vmatprep.subr.mxu0 0.0
    %213 = vmatpush1.msra.mxu0 0.0
    %214 = vmatprep.subr.mxu0 0.0
    %215 = vmatpush1.msra.mxu0 0.0
    %216 = vmatprep.subr.mxu0 0.0
    %217 = vmatpush1.msra.mxu0 0.0
    %218 = vmatprep.subr.mxu0 0.0
    %219 = vmatpush1.msra.mxu0 0.0
    %220 = vmatprep.subr.mxu0 0.0
    %221 = vmatpush1.msra.mxu0 0.0
    %222 = vmatprep.subr.mxu0 0.0
    %223 = vmatpush1.msra.mxu0 0.0
    %224 = vmatprep.subr.mxu0 0.0
    %225 = vmatpush1.msra.mxu0 0.0
    %226 = vmatprep.subr.mxu0 0.0
    %227 = vmatpush1.msra.mxu0 0.0
    %228 = vmatprep.subr.mxu0 0.0
    %229 = vmatpush1.msra.mxu0 0.0
    %230 = vmatprep.subr.mxu0 0.0
    %231 = vmatpush1.msra.mxu0 0.0
    %232 = vmatprep.subr.mxu0 0.0
    %233 = vmatpush1.msra.mxu0 0.0
    %234 = vmatprep.subr.mxu0 0.0
    %235 = vmatpush1.msra.mxu0 0.0
    %236 = vmatprep.subr.mxu0 0.0
    %237 = vmatpush1.msra.mxu0 0.0
    %238 = vmatprep.subr.mxu0 0.0
    %239 = vmatpush1.msra.mxu0 0.0
    %240 = vmatprep.subr.mxu0 0.0
    %241 = vmatpush1.msra.mxu0 0.0
    %242 = vmatprep.subr.mxu0 0.0
    %243 = vmatpush1.msra.mxu0 0.0
    %244 = vmatprep.subr.mxu0 0.0
    %245 = vmatpush1.msra.mxu0 0.0
    %246 = vmatprep.subr.mxu0 0.0
    %247 = vmatpush1.msra.mxu0 0.0
    %248 = vmatprep.subr.mxu0 0.0
    %249 = vmatpush1.msra.mxu0 0.0
    %250 = vmatprep.mubr.f32.mxu0 0.0
    %251 = vmatmul.mubr.f32.gmra.mrb[0].mxu0 %v184
    %v252 = vpop.f32.mrb[0].mxu0
    %v253 = vadd.f32 0.0, %v252
    %v254 = vpop.f32.mrb[0].mxu0
    %255 = vdwg.mxu0
    %vm256 = vcmask 130048
    %257 = vst.msk [vmem:[#allocation2] sm:$0xff] %vm256, %v253
    // Predicated region
    $region18: #{_fused_mlp_forward.1} parent=1 // pred_check
      _
    $region19: #{_fused_mlp_forward.1} parent=1 // pred_check_branch
      %259 = sbr.rel (0) target = $region21
    $region20: #{_fused_mlp_forward.1} parent=1 // pred_region
      %s261 = ssub.s32 128, 128
      %262 = vsyncadd [#allocation3], %s261
      %s264 = sshll.u32 [#allocation2], 4
      %s265 = int_to_ptr.vmem [resolvable:$true] %s264
      %267 = dma.vmem_to_hbm [thread:$0]  %s265, 128, %s4, [#allocation3]
    $region21: #{_fused_mlp_forward.1} parent=1 // pred_fallthru
      _
    // Predicated region
    $region22: #{_fused_mlp_forward.1} parent=1 // pred_check
      _
    $region23: #{_fused_mlp_forward.1} parent=1 // pred_check_branch
      %269 = sbr.rel (0) target = $region25
    $region24: #{_fused_mlp_forward.1} parent=1 // pred_region
      %270 = dma.done [#allocation3], 128
    $region25: #{_fused_mlp_forward.1} parent=1 // pred_fallthru
      _
    %271 = vsyncpa [#allocation3], 1

</llo_original>
